<compile_context>
chip_gen: v7x
topology: tpu7x:2x2x1
jax: 0.10.0
libtpu: 0.0.40
codegen_flags: <defaults>
</compile_context>

<pallas_src>
import jax
import jax.numpy as jnp
from jax import lax
from jax.experimental import pallas as pl
from jax.experimental.pallas import tpu as pltpu

EPS = 1e-5


def _pick_th(H, W, rows_cap):
    """Output rows per tile: largest even divisor of H whose tile (th*W pixels)
    is a multiple of 128 (lane-dense pass-2 stores) and fits rows_cap."""
    cands = [th for th in range(2, H + 1, 2)
             if H % th == 0 and th * W <= rows_cap and (th * W) % 128 == 0]
    if cands:
        return max(cands)
    if H % 2:
        raise ValueError(f"H={H} must be even (2-row halo blocks require an "
                         f"even tile height).")
    # Explicit (not silent) fallback, per review: TH=H means TM=H*W may not be
    # a multiple of 128 -> masked partial-lane stores in pass 2 (perf cliff).
    print(f"WARNING: no 128-aligned H-tile for H={H}, W={W}; using TH=H "
          f"(possible partial-lane stores in pass 2).")
    return H


def rescale_layer_conv(x_nchw, conv_w, conv_b, bn_w, *, eps=EPS,
                       rows_per_tile=1024, vmem_limit_mb=32):
    """Forward of RescaleLayer(Conv2d(.., 3x3, stride=1, pad=1)) in training mode.

    x_nchw : [N, Cin, H, W] f32;  conv_w : [Cout, Cin, 3, 3];
    conv_b : [Cout];  bn_w : [Cout].   Returns [N, Cout, H, W] f32.
    """
    N, Cin, H, W = x_nchw.shape
    Cout, _, KH, KW = conv_w.shape
    assert (KH, KW) == (3, 3), "kernel specialized to 3x3 stride-1 pad-1 convs"
    pad = KH // 2
    Wp = W + 2 * pad

    TH = _pick_th(H, W, rows_per_tile)       # output image rows per tile
    nH = H // TH
    TM = TH * W                              # output pixels per tile
    Cp = ((Cout + 127) // 128) * 128         # lane-padded channel count
    K = KH * KW * Cin                        # folded contraction depth

    # -------------------- wrapper glue (layout only) -----------------------
    # Single padded NHWC bf16 copy; both passes stream from it directly.
    x_nhwc = jnp.transpose(x_nchw, (0, 2, 3, 1)).astype(jnp.bfloat16)
    x_pad = jnp.pad(x_nhwc, ((0, 0), (pad, pad), (pad, pad), (0, 0)))  # [N,Hp,Wp,Cin]

    # conv weight [Cout,Cin,KH,KW] -> [K, Cp] bf16 with K ordered (kh, kw, cin)
    # to match the in-kernel patch concatenation order.
    w_flat = jnp.transpose(conv_w, (2, 3, 1, 0)).reshape(K, Cout)
    w_flat = jnp.pad(w_flat, ((0, 0), (0, Cp - Cout))).astype(jnp.bfloat16)

    # Core TH-row block + 2-row bottom-halo block of the SAME padded array.
    core_spec = pl.BlockSpec((None, TH, Wp, Cin), lambda n, t: (n, t, 0, 0))
    halo_spec = pl.BlockSpec((None, 2, Wp, Cin),
                             lambda n, t: (n, (t + 1) * (TH // 2), 0, 0))
    w_spec = pl.BlockSpec((K, Cp), lambda n, t: (0, 0))
    col_spec = pl.BlockSpec((Cout, 1), lambda n, t: (0, 0))

    def cparams(sem):
        # 32 MiB keeps headroom under v7x's 64 MiB physical VMEM; the actual
        # working set at these tile sizes is far smaller.  Raise together with
        # rows_per_tile on v5e/v6e (128 MiB VMEM).
        return pltpu.CompilerParams(dimension_semantics=sem,
                                    vmem_limit_bytes=vmem_limit_mb << 20)

    def conv_tile(core, halo, w_ref):
        """3x3 conv of one haloed H-tile as a single K=9*Cin MXU matmul."""
        win = jnp.concatenate([core, halo], axis=0)          # [TH+2, Wp, Cin] bf16
        taps = [win[kh:kh + TH, kw:kw + W, :]
                for kh in range(KH) for kw in range(KW)]      # 9 x [TH, W, Cin]
        patch = jnp.concatenate(taps, axis=-1).reshape(TM, K)  # [TM, 9*Cin] bf16
        return jnp.dot(patch, w_ref[...],
                       preferred_element_type=jnp.float32)     # [TM, Cp] f32

    # ------------------------- pass 1: moments -----------------------------
    def moments_kernel(core_ref, halo_ref, w_ref, mom_ref):
        @pl.when(pl.program_id(1) == 0)
        def _init():
            mom_ref[...] = jnp.zeros_like(mom_ref)
        # bias-free: variance is shift-invariant.
        y = conv_tile(core_ref[...], halo_ref[...], w_ref)
        mom_ref[0:1, :] += jnp.sum(y, axis=0, keepdims=True)
        mom_ref[1:2, :] += jnp.sum(y * y, axis=0, keepdims=True)

    mom_n = pl.pallas_call(
        moments_kernel,
        out_shape=jax.ShapeDtypeStruct((N, 2, Cp), jnp.float32),
        grid_spec=pltpu.PrefetchScalarGridSpec(
            num_scalar_prefetch=0, grid=(N, nH),
            in_specs=[core_spec, halo_spec, w_spec],
            out_specs=pl.BlockSpec((None, 2, Cp), lambda n, t: (n, 0, 0))),
        # axis 0 parallel: per-batch partial moments -> megacore on v7x and a
        # pairwise (per-batch) reduction instead of one long serial sum.
        compiler_params=cparams(("parallel", "arbitrary")),
    )(x_pad, x_pad, w_flat)

    # ---- tiny inter-pass math: per-channel scale, computed exactly once ----
    mom = jnp.sum(mom_n, axis=0)                       # [2, Cp] f32
    total = jnp.float32(N * H * W)
    mean = mom[0, :Cout] / total
    var = jnp.maximum(mom[1, :Cout] / total - mean * mean, 0.0)
    var = var * (total / (total - 1.0))                # torch .var(): unbiased
    scale = bn_w.astype(jnp.float32) / jnp.sqrt(var + eps)        # [Cout]
    scale_cm = scale.reshape(Cout, 1)
    bias_cm = (conv_b.astype(jnp.float32) * scale).reshape(Cout, 1)

    # -------------------- pass 2: conv + rescale + store --------------------
    def rescale_kernel(core_ref, halo_ref, w_ref, s_ref, b_ref, o_ref):
        y = conv_tile(core_ref[...], halo_ref[...], w_ref)        # [TM, Cp] f32
        y_cm = y[:, :Cout].T        # slice BEFORE transposing: Cp/Cout less XLU
        # Epilogue on the small [Cout, TM] slab; bias already pre-scaled.
        o_ref[...] = (y_cm * s_ref[...] + b_ref[...]).astype(o_ref.dtype)

    out_flat = pl.pallas_call(
        rescale_kernel,
        out_shape=jax.ShapeDtypeStruct((N, Cout, H * W), jnp.float32),
        grid_spec=pltpu.PrefetchScalarGridSpec(
            num_scalar_prefetch=0, grid=(N, nH),
            in_specs=[core_spec, halo_spec, w_spec, col_spec, col_spec],
            out_specs=pl.BlockSpec((None, Cout, TM), lambda n, t: (n, 0, t))),
        compiler_params=cparams(("parallel", "parallel")),
    )(x_pad, x_pad, w_flat, scale_cm, bias_cm)

    # Transposed, lane-dense store landed directly in channel-major order:
    # the final NCHW result is a free reshape.
    return out_flat.reshape(N, Cout, H, W)


def _reference(x_nchw, conv_w, conv_b, bn_w, eps=EPS):
    # The kernel feeds bf16 operands to the MXU (f32 accumulation); mirror that
    # rounding here so the comparison isolates kernel correctness.
    xb = x_nchw.astype(jnp.bfloat16).astype(jnp.float32)
    wb = conv_w.astype(jnp.bfloat16).astype(jnp.float32)
    y = lax.conv_general_dilated(
        xb, wb, window_strides=(1, 1), padding="SAME",
        dimension_numbers=("NCHW", "OIHW", "NCHW"),
    ) + conv_b[None, :, None, None]
    var = jnp.var(y, axis=(0, 2, 3), ddof=1)    # torch Tensor.var default: unbiased
    return y / jnp.sqrt(var[None, :, None, None] + eps) * bn_w[None, :, None, None]


if __name__ == "__main__":
    key = jax.random.PRNGKey(0)
    k1, k2, k3, k4 = jax.random.split(key, 4)

    N, Cin, H, W = 2, 4, 16, 16
    Cout, KH, KW = 8, 3, 3

    x = jax.random.normal(k1, (N, Cin, H, W), dtype=jnp.float32)
    conv_w = jax.random.normal(k2, (Cout, Cin, KH, KW), dtype=jnp.float32) * 0.1
    conv_b = jax.random.normal(k3, (Cout,), dtype=jnp.float32) * 0.1
    bn_w = jax.random.uniform(k4, (Cout,), dtype=jnp.float32, minval=0.5, maxval=1.5)

    # rows_per_tile=128 -> TH=8, nH=2: exercises the cross-tile moment
    # accumulator, the halo fetch, and a multi-step pipelined (N, nH) grid
    # even at toy size.
    out = jax.block_until_ready(
        rescale_layer_conv(x, conv_w, conv_b, bn_w, rows_per_tile=128))
    ref = _reference(x, conv_w, conv_b, bn_w)

    assert out.shape == (N, Cout, H, W)
    assert jnp.allclose(out, ref, atol=2e-3, rtol=2e-3), \
        float(jnp.max(jnp.abs(out - ref)))
    print("KERNEL_OK")
</pallas_src>

<mosaic_0001>
module attributes {stable_mosaic.version = 11 : i64} {
  func.func @moments_kernel(%arg0: i32, %arg1: i32, %arg2: memref<1x8x18x4xbf16, #tpu.memory_space<vmem>>, %arg3: memref<1x2x18x4xbf16, #tpu.memory_space<vmem>>, %arg4: memref<36x128xbf16, #tpu.memory_space<vmem>>, %arg5: memref<1x2x128xf32, #tpu.memory_space<vmem>>) attributes {dimension_semantics = [#tpu.dimension_semantics<parallel>, #tpu.dimension_semantics<arbitrary>], iteration_bounds = array<i64: 2, 2>, scalar_prefetch = 0 : i64, scratch_operands = 0 : i64, tpu.core_type = #tpu.core_type<tc>, window_params = [{transform_indices = @transform_0, window_bounds = array<i64: 1, 8, 18, 4>}, {transform_indices = @transform_1, window_bounds = array<i64: 1, 2, 18, 4>}, {pipeline_mode = #tpu.pipeline_mode<synchronous>, transform_indices = @transform_2, window_bounds = array<i64: 36, 128>}, {transform_indices = @transform_3, window_bounds = array<i64: 1, 2, 128>}]} {
    %c0_i32 = arith.constant 0 : i32
    %0 = arith.cmpi eq, %arg1, %c0_i32 : i32
    %1 = arith.extui %0 : i1 to i32
    %c0_i32_0 = arith.constant 0 : i32
    %2 = arith.cmpi ne, %1, %c0_i32_0 : i32
    scf.if %2 {
      %cst_23 = arith.constant 0.000000e+00 : f32
      %38 = vector.broadcast %cst_23 : f32 to vector<2x128xf32>
      %c0_24 = arith.constant 0 : index
      %c0_25 = arith.constant 0 : index
      %c0_26 = arith.constant 0 : index
      %39 = vector.load %arg5[%c0_24, %c0_25, %c0_26] : memref<1x2x128xf32, #tpu.memory_space<vmem>>, vector<1x2x128xf32>
      %40 = vector.shape_cast %39 : vector<1x2x128xf32> to vector<2x128xf32>
      %41 = vector.shape_cast %38 : vector<2x128xf32> to vector<1x2x128xf32>
      tpu.vector_store %arg5[%c0_24, %c0_25, %c0_26], %41 {strides = array<i32>} : memref<1x2x128xf32, #tpu.memory_space<vmem>>, vector<1x2x128xf32>,
    } else {
    }
    %c0 = arith.constant 0 : index
    %c0_1 = arith.constant 0 : index
    %c0_2 = arith.constant 0 : index
    %c0_3 = arith.constant 0 : index
    %3 = vector.load %arg2[%c0, %c0_1, %c0_2, %c0_3] : memref<1x8x18x4xbf16, #tpu.memory_space<vmem>>, vector<1x8x18x4xbf16>
    %4 = vector.shape_cast %3 : vector<1x8x18x4xbf16> to vector<8x18x4xbf16>
    %c0_4 = arith.constant 0 : index
    %c0_5 = arith.constant 0 : index
    %c0_6 = arith.constant 0 : index
    %c0_7 = arith.constant 0 : index
    %5 = vector.load %arg3[%c0_4, %c0_5, %c0_6, %c0_7] : memref<1x2x18x4xbf16, #tpu.memory_space<vmem>>, vector<1x2x18x4xbf16>
    %6 = vector.shape_cast %5 : vector<1x2x18x4xbf16> to vector<2x18x4xbf16>
    %7 = tpu.concatenate %4, %6 in 0 : vector<8x18x4xbf16>, vector<2x18x4xbf16> -> vector<10x18x4xbf16>
    %8 = vector.extract_strided_slice %7 {offsets = [0, 0, 0], sizes = [8, 16, 4], strides = [1, 1, 1]} : vector<10x18x4xbf16> to vector<8x16x4xbf16>
    %9 = vector.extract_strided_slice %7 {offsets = [0, 1, 0], sizes = [8, 16, 4], strides = [1, 1, 1]} : vector<10x18x4xbf16> to vector<8x16x4xbf16>
    %10 = vector.extract_strided_slice %7 {offsets = [0, 2, 0], sizes = [8, 16, 4], strides = [1, 1, 1]} : vector<10x18x4xbf16> to vector<8x16x4xbf16>
    %11 = vector.extract_strided_slice %7 {offsets = [1, 0, 0], sizes = [8, 16, 4], strides = [1, 1, 1]} : vector<10x18x4xbf16> to vector<8x16x4xbf16>
    %12 = vector.extract_strided_slice %7 {offsets = [1, 1, 0], sizes = [8, 16, 4], strides = [1, 1, 1]} : vector<10x18x4xbf16> to vector<8x16x4xbf16>
    %13 = vector.extract_strided_slice %7 {offsets = [1, 2, 0], sizes = [8, 16, 4], strides = [1, 1, 1]} : vector<10x18x4xbf16> to vector<8x16x4xbf16>
    %14 = vector.extract_strided_slice %7 {offsets = [2, 0, 0], sizes = [8, 16, 4], strides = [1, 1, 1]} : vector<10x18x4xbf16> to vector<8x16x4xbf16>
    %15 = vector.extract_strided_slice %7 {offsets = [2, 1, 0], sizes = [8, 16, 4], strides = [1, 1, 1]} : vector<10x18x4xbf16> to vector<8x16x4xbf16>
    %16 = vector.extract_strided_slice %7 {offsets = [2, 2, 0], sizes = [8, 16, 4], strides = [1, 1, 1]} : vector<10x18x4xbf16> to vector<8x16x4xbf16>
    %17 = tpu.concatenate %8, %9, %10, %11, %12, %13, %14, %15, %16 in 2 : vector<8x16x4xbf16>, vector<8x16x4xbf16>, vector<8x16x4xbf16>, vector<8x16x4xbf16>, vector<8x16x4xbf16>, vector<8x16x4xbf16>, vector<8x16x4xbf16>, vector<8x16x4xbf16>, vector<8x16x4xbf16> -> vector<8x16x36xbf16>
    %18 = vector.shape_cast %17 : vector<8x16x36xbf16> to vector<128x36xbf16>
    %c0_8 = arith.constant 0 : index
    %c0_9 = arith.constant 0 : index
    %19 = vector.load %arg4[%c0_8, %c0_9] : memref<36x128xbf16, #tpu.memory_space<vmem>>, vector<36x128xbf16>
    %cst = arith.constant dense<0.000000e+00> : vector<128x128xf32>
    %20 = tpu.matmul %18, %19, %cst {dimension_numbers = #tpu.dot_dimension_numbers<[1], [0], [0], [1], [0, 0, 1, 1], [], []>} : vector<128x36xbf16>, vector<36x128xbf16>, vector<128x128xf32> -> vector<128x128xf32>
    %c0_10 = arith.constant 0 : index
    %c0_11 = arith.constant 0 : index
    %c0_12 = arith.constant 0 : index
    %21 = vector.load %arg5[%c0_10, %c0_11, %c0_12] : memref<1x2x128xf32, #tpu.memory_space<vmem>>, vector<1x1x128xf32>
    %22 = vector.shape_cast %21 : vector<1x1x128xf32> to vector<1x128xf32>
    %cst_13 = arith.constant dense<0.000000e+00> : vector<128xf32>
    %23 = vector.multi_reduction <add>, %20, %cst_13 [0] : vector<128x128xf32> to vector<128xf32>
    %24 = vector.shape_cast %23 : vector<128xf32> to vector<1x128xf32>
    %25 = arith.addf %22, %24 : vector<1x128xf32>
    %c0_14 = arith.constant 0 : index
    %c0_15 = arith.constant 0 : index
    %c0_16 = arith.constant 0 : index
    %26 = vector.load %arg5[%c0_14, %c0_15, %c0_16] : memref<1x2x128xf32, #tpu.memory_space<vmem>>, vector<1x1x128xf32>
    %27 = vector.shape_cast %26 : vector<1x1x128xf32> to vector<1x128xf32>
    %28 = vector.shape_cast %25 : vector<1x128xf32> to vector<1x1x128xf32>
    tpu.vector_store %arg5[%c0_14, %c0_15, %c0_16], %28 {strides = array<i32>} : memref<1x2x128xf32, #tpu.memory_space<vmem>>, vector<1x1x128xf32>,
    %c0_17 = arith.constant 0 : index
    %c1 = arith.constant 1 : index
    %c0_18 = arith.constant 0 : index
    %29 = vector.load %arg5[%c0_17, %c1, %c0_18] : memref<1x2x128xf32, #tpu.memory_space<vmem>>, vector<1x1x128xf32>
    %30 = vector.shape_cast %29 : vector<1x1x128xf32> to vector<1x128xf32>
    %31 = arith.mulf %20, %20 : vector<128x128xf32>
    %cst_19 = arith.constant dense<0.000000e+00> : vector<128xf32>
    %32 = vector.multi_reduction <add>, %31, %cst_19 [0] : vector<128x128xf32> to vector<128xf32>
    %33 = vector.shape_cast %32 : vector<128xf32> to vector<1x128xf32>
    %34 = arith.addf %30, %33 : vector<1x128xf32>
    %c0_20 = arith.constant 0 : index
    %c1_21 = arith.constant 1 : index
    %c0_22 = arith.constant 0 : index
    %35 = vector.load %arg5[%c0_20, %c1_21, %c0_22] : memref<1x2x128xf32, #tpu.memory_space<vmem>>, vector<1x1x128xf32>
    %36 = vector.shape_cast %35 : vector<1x1x128xf32> to vector<1x128xf32>
    %37 = vector.shape_cast %34 : vector<1x128xf32> to vector<1x1x128xf32>
    tpu.vector_store %arg5[%c0_20, %c1_21, %c0_22], %37 {strides = array<i32>} : memref<1x2x128xf32, #tpu.memory_space<vmem>>, vector<1x1x128xf32>,
    return
  }
  func.func @transform_0(%arg0: i32, %arg1: i32) -> (i32, i32, i32, i32) {
    %c0_i32 = arith.constant 0 : i32
    %c0_i32_0 = arith.constant 0 : i32
    %c0_i32_1 = arith.constant 0 : i32
    return %arg0, %arg1, %c0_i32, %c0_i32_0 : i32, i32, i32, i32
  }
  func.func @transform_1(%arg0: i32, %arg1: i32) -> (i32, i32, i32, i32) {
    %c1_i32 = arith.constant 1 : i32
    %0 = arith.addi %arg1, %c1_i32 : i32
    %c4_i32 = arith.constant 4 : i32
    %1 = arith.muli %0, %c4_i32 : i32
    %c0_i32 = arith.constant 0 : i32
    %c0_i32_0 = arith.constant 0 : i32
    %c0_i32_1 = arith.constant 0 : i32
    return %arg0, %1, %c0_i32, %c0_i32_0 : i32, i32, i32, i32
  }
  func.func @transform_2(%arg0: i32, %arg1: i32) -> (i32, i32) {
    %c0_i32 = arith.constant 0 : i32
    %c0_i32_0 = arith.constant 0 : i32
    %c0_i32_1 = arith.constant 0 : i32
    return %c0_i32, %c0_i32_0 : i32, i32
  }
  func.func @transform_3(%arg0: i32, %arg1: i32) -> (i32, i32, i32) {
    %c0_i32 = arith.constant 0 : i32
    %c0_i32_0 = arith.constant 0 : i32
    %c0_i32_1 = arith.constant 0 : i32
    return %arg0, %c0_i32, %c0_i32_0 : i32, i32, i32
  }
}

</mosaic_0001>

<llo_original>
// kernel: tpu_custom_call.1
$region0: #{tpu_custom_call.1}
  #allocation0 [shape = 'u32[]', space=smem, size = 0x4, offset = 0x4, fixed_abs, tag = 'smem constant byte address 0x4 - core index']
  #allocation1 [shape = 'u32[144,128]{1,0:T(1,128)}', space=vmem, size = 0x12000, scoped, tag = 'internal scratch']
  %s0 = inlined_call_operand.vmem [shape: bf16[2,18,18,4], index: 0, kind: input, shape index: {}]
  %s1 = inlined_call_operand.vmem [shape: bf16[2,18,18,4], index: 1, kind: input, shape index: {}]
  %s2 = inlined_call_operand.vmem [shape: bf16[36,128], index: 2, kind: input, shape index: {}]
  %s3 = inlined_call_operand.hbm [shape: f32[2,2,128], index: 3, kind: output, shape index: {}]
  %s4 = sld [smem:[#allocation0]]
  $region49: #{tpu_custom_call.1} parent=0
    _
  %s6 = ssub.s32 1, %s4
  %s7 = scalar_select 0, %s6, %s4
  $region1: #{tpu_custom_call.1} parent=0
    #allocation2 [shape = 'u8[2048]{0}', space=vmem, size = 0x800, scoped, tag = 'output window, operand 0']
    #allocation3 [shape = 's32[2]{0}', space=sflag, size = 0x8, scoped, tag = 'scoped memory for tpu_custom_call.1']
    %8 = vsyncpa [#allocation3], 0
    %s9 = scalar_lea.sflag [#allocation3], 1
    %10 = vsyncpa %s9, 0
    loop: start=0, step=1, limit=6
    $region2: #{tpu_custom_call.1} parent=1 // loop_pre_header
      _
    $region3: #{tpu_custom_call.1} parent=1 // loop_header
      %s12 = sphi 0, %s16
      %p13 = scmp.ge.s32.totalorder %s12, 6
      %s19 = sphi 0, %s31
      %s20 = sphi 0, %s27
      %s21 = sphi 0, %s19
      %s22 = sphi 0, %s20
      %s23 = sphi 0, %s21
      %s24 = sphi 0, %s22
      %s36 = sphi 0, %s38
      %s39 = sphi 0, %s36
      %s40 = sphi 0, %s39
      %s56 = sphi 0, %s40
      %s68 = sphi 0, %s70
      %s71 = sphi 0, %s68
      %s72 = sphi 0, %s71
      %s88 = sphi 0, %s72
      %s92 = sphi 0, %s92
      %s94 = sphi 0, %s92
      %s95 = sphi 0, %s94
      %s109 = sphi 0, %s95
      %s115 = sphi 0, %s117
      %s118 = sphi 0, %s115
      %s119 = sphi 0, %s118
      %s135 = sphi 0, %s119
    $region4: #{tpu_custom_call.1} parent=1 // loop_header_branch
      %15 = sbr.rel (%p13) target = $region8
    $region5: #{tpu_custom_call.1} parent=1 // loop_body
      %s17 = ssub.s32 %s12, 1
      %s18 = ssub.s32 %s12, 2
      %s25 = sadd.s32 1, %s20
      %p26 = scmp.ge.s32.totalorder %s25, 2
      %s27 = scalar_select %p26, 0, %s25
      %s28 = sadd.s32 1, %s19
      %s29 = scalar_select %p26, %s28, %s19
      %p30 = scmp.ge.s32.totalorder %s29, 2
      %s31 = scalar_select %p30, 0, %s29
      %s32 = ssub.s32 %s19, %s31
      %s33 = ssub.s32 %s20, %s27
      %s34 = sor.u32 %s32, %s33
      %p35 = scmp.eq.s32.totalorder %s34, 0
      %s37 = sadd.s32 %s36, 1
      %s38 = scalar_select %p35, %s36, %s37
      %p41 = pneg %p35
      %p42 = scmp.eq.s32.totalorder %s12, 3
      %p43 = por %p41, %p42
      %p44 = scmp.ne.s32.totalorder %s36, %s39
      %p45 = scmp.eq.s32.totalorder %s12, 0
      %p46 = por %p44, %p45
      %p47 = scmp.ne.s32.totalorder %s36, %s39
      %p48 = scmp.eq.s32.totalorder %s17, 3
      %p49 = por %p47, %p48
      %p50 = scmp.ne.s32.totalorder %s39, %s40
      %p51 = scmp.eq.s32.totalorder %s17, 0
      %p52 = por %p50, %p51
      %p53 = scmp.ne.s32.totalorder %s39, %s40
      %p54 = scmp.eq.s32.totalorder %s18, 3
      %p55 = por %p53, %p54
      %p57 = scmp.ne.s32.totalorder %s40, %s56
      %p58 = scmp.eq.s32.totalorder %s18, 0
      %p59 = por %p57, %p58
      %s60 = sadd.s32 %s20, 1
      %s61 = smul.u32 %s60, 4
      %s62 = sadd.s32 %s27, 1
      %s63 = smul.u32 %s62, 4
      %s64 = ssub.s32 %s19, %s31
      %s65 = ssub.s32 %s61, %s63
      %s66 = sor.u32 %s64, %s65
      %p67 = scmp.eq.s32.totalorder %s66, 0
      %s69 = sadd.s32 %s68, 1
      %s70 = scalar_select %p67, %s68, %s69
      %p73 = pneg %p67
      %p74 = scmp.eq.s32.totalorder %s12, 3
      %p75 = por %p73, %p74
      %p76 = scmp.ne.s32.totalorder %s68, %s71
      %p77 = scmp.eq.s32.totalorder %s12, 0
      %p78 = por %p76, %p77
      %p79 = scmp.ne.s32.totalorder %s68, %s71
      %p80 = scmp.eq.s32.totalorder %s17, 3
      %p81 = por %p79, %p80
      %p82 = scmp.ne.s32.totalorder %s71, %s72
      %p83 = scmp.eq.s32.totalorder %s17, 0
      %p84 = por %p82, %p83
      %p85 = scmp.ne.s32.totalorder %s71, %s72
      %p86 = scmp.eq.s32.totalorder %s18, 3
      %p87 = por %p85, %p86
      %p89 = scmp.ne.s32.totalorder %s72, %s88
      %p90 = scmp.eq.s32.totalorder %s18, 0
      %p91 = por %p89, %p90
      %s93 = sadd.s32 %s92, 1
      %p96 = scmp.eq.s32.totalorder %s12, 3
      %p97 = scmp.ne.s32.totalorder %s92, %s94
      %p98 = scmp.eq.s32.totalorder %s12, 0
      %p99 = por %p97, %p98
      %p100 = scmp.ne.s32.totalorder %s92, %s94
      %p101 = scmp.eq.s32.totalorder %s17, 3
      %p102 = por %p100, %p101
      %p103 = scmp.ne.s32.totalorder %s94, %s95
      %p104 = scmp.eq.s32.totalorder %s17, 0
      %p105 = por %p103, %p104
      %p106 = scmp.ne.s32.totalorder %s94, %s95
      %p107 = scmp.eq.s32.totalorder %s18, 3
      %p108 = por %p106, %p107
      %p110 = scmp.ne.s32.totalorder %s95, %s109
      %p111 = scmp.eq.s32.totalorder %s18, 0
      %p112 = por %p110, %p111
      %s113 = ssub.s32 %s19, %s31
      %p114 = scmp.eq.s32.totalorder %s113, 0
      %s116 = sadd.s32 %s115, 1
      %s117 = scalar_select %p114, %s115, %s116
      %p120 = pneg %p114
      %p121 = scmp.eq.s32.totalorder %s12, 3
      %p122 = por %p120, %p121
      %p123 = scmp.ne.s32.totalorder %s115, %s118
      %p124 = scmp.eq.s32.totalorder %s12, 0
      %p125 = por %p123, %p124
      %p126 = scmp.ne.s32.totalorder %s115, %s118
      %p127 = scmp.eq.s32.totalorder %s17, 3
      %p128 = por %p126, %p127
      %p129 = scmp.ne.s32.totalorder %s118, %s119
      %p130 = scmp.eq.s32.totalorder %s17, 0
      %p131 = por %p129, %p130
      %p132 = scmp.ne.s32.totalorder %s118, %s119
      %p133 = scmp.eq.s32.totalorder %s18, 3
      %p134 = por %p132, %p133
      %p136 = scmp.ne.s32.totalorder %s119, %s135
      %p137 = scmp.eq.s32.totalorder %s18, 0
      %p138 = por %p136, %p137
      %p139 = scmp.le.s32.totalorder 1, %s12
      %p140 = scmp.lt.s32.totalorder %s12, 5
      %p141 = pnand %p139, %p140
      %p142 = pneg %p141
      // Predicated region
      $region9: #{tpu_custom_call.1} parent=5 // pred_check
        _
      $region10: #{tpu_custom_call.1} parent=5 // pred_check_branch
        %144 = sbr.rel (%p141) target = $region12
      $region11: #{tpu_custom_call.1} parent=5 // pred_region
        %s145 = ssub.s32 %s12, 1
        // Predicated region
        $region13: #{tpu_custom_call.1} parent=11 // pred_check
          %p146 = pneg %p105
        $region14: #{tpu_custom_call.1} parent=11 // pred_check_branch
          %148 = sbr.rel (%p146) target = $region16
        $region15: #{tpu_custom_call.1} parent=11 // pred_region
          _
        $region16: #{tpu_custom_call.1} parent=11 // pred_fallthru
          _
      $region12: #{tpu_custom_call.1} parent=5 // pred_fallthru
        _
      %p149 = scmp.lt.s32.totalorder %s12, 4
      // Predicated region
      $region17: #{tpu_custom_call.1} parent=5 // pred_check
        %p150 = pneg %p149
      $region18: #{tpu_custom_call.1} parent=5 // pred_check_branch
        %152 = sbr.rel (%p150) target = $region20
      $region19: #{tpu_custom_call.1} parent=5 // pred_region
        // Predicated region
        $region21: #{tpu_custom_call.1} parent=19 // pred_check
          %p153 = pneg %p46
        $region22: #{tpu_custom_call.1} parent=19 // pred_check_branch
          %155 = sbr.rel (%p153) target = $region24
        $region23: #{tpu_custom_call.1} parent=19 // pred_region
          %s156 = smul.u32 8, %s20
          %s157 = ssub.s32 18, %s156
          %p158 = scmp.lt.s32.totalorder %s157, 8
          %s159 = scalar_select %p158, %s157, 8
          %s160 = smul.u32 64, %s159
          %s161 = smul.u32 %s160, 3
          %p162 = scmp.lt.s32.totalorder %s19, 1
          %s163 = scalar_select %p162, %s19, 1
          %p164 = scmp.lt.s32.totalorder %s156, 17
          %s165 = scalar_select %p164, %s156, 17
          %s166 = smul.addr %s165, 3
          %s167 = smul.addr %s163, 54
          %s168 = sadd.s32 %s166, %s167
          %s169 = smul.addr %s168, 4
          %s170 = scalar_lea.vmem %s0, %s169
          %s171 = smul.u32 8, %s20
          %s172 = ssub.s32 18, %s171
          %p173 = scmp.lt.s32.totalorder %s172, 8
          %s174 = scalar_select %p173, %s172, 8
          %s175 = smul.u32 64, %s174
          %s176 = smul.u32 %s175, 3
        $region24: #{tpu_custom_call.1} parent=19 // pred_fallthru
          _
        // Predicated region
        $region25: #{tpu_custom_call.1} parent=19 // pred_check
          %p177 = pneg %p78
        $region26: #{tpu_custom_call.1} parent=19 // pred_check_branch
          %179 = sbr.rel (%p177) target = $region28
        $region27: #{tpu_custom_call.1} parent=19 // pred_region
          %s180 = sadd.s32 %s20, 1
          %s181 = smul.u32 %s180, 4
          %s182 = smul.u32 2, %s181
          %p183 = scmp.lt.s32.totalorder %s19, 1
          %s184 = scalar_select %p183, %s19, 1
          %p185 = scmp.lt.s32.totalorder %s182, 17
          %s186 = scalar_select %p185, %s182, 17
          %s187 = smul.addr %s186, 3
          %s188 = smul.addr %s184, 54
          %s189 = sadd.s32 %s187, %s188
          %s190 = smul.addr %s189, 4
          %s191 = scalar_lea.vmem %s1, %s190
          %s192 = sadd.s32 %s20, 1
          %s193 = smul.u32 %s192, 4
          %s194 = smul.u32 2, %s193
        $region28: #{tpu_custom_call.1} parent=19 // pred_fallthru
          _
      $region20: #{tpu_custom_call.1} parent=5 // pred_fallthru
        _
      %p195 = scmp.le.s32.totalorder 1, %s12
      %p196 = scmp.lt.s32.totalorder %s12, 5
      %p197 = pnand %p195, %p196
      %p198 = pneg %p197
      // Predicated region
      $region29: #{tpu_custom_call.1} parent=5 // pred_check
        _
      $region30: #{tpu_custom_call.1} parent=5 // pred_check_branch
        %200 = sbr.rel (%p197) target = $region32
      $region31: #{tpu_custom_call.1} parent=5 // pred_region
        %s201 = ssub.s32 %s12, 1
        %s202 = smul.u32 8, %s22
        %s203 = ssub.s32 18, %s202
        %p204 = scmp.lt.s32.totalorder %s203, 8
        %s205 = scalar_select %p204, %s203, 8
        %s206 = smul.u32 64, %s205
        %s207 = smul.u32 %s206, 3
        %p208 = scmp.lt.s32.totalorder %s21, 1
        %s209 = scalar_select %p208, %s21, 1
        %p210 = scmp.lt.s32.totalorder %s202, 17
        %s211 = scalar_select %p210, %s202, 17
        %s212 = smul.addr %s211, 3
        %s213 = smul.addr %s209, 54
        %s214 = sadd.s32 %s212, %s213
        %s215 = smul.addr %s214, 4
        %s216 = scalar_lea.vmem %s0, %s215
        %p217 = pneg %p52
        %p218 = pneg %p49
        %s219 = sadd.s32 %s22, 1
        %s220 = smul.u32 %s219, 4
        %s221 = smul.u32 2, %s220
        %p222 = scmp.lt.s32.totalorder %s21, 1
        %s223 = scalar_select %p222, %s21, 1
        %p224 = scmp.lt.s32.totalorder %s221, 17
        %s225 = scalar_select %p224, %s221, 17
        %s226 = smul.addr %s225, 3
        %s227 = smul.addr %s223, 54
        %s228 = sadd.s32 %s226, %s227
        %s229 = smul.addr %s228, 4
        %s230 = scalar_lea.vmem %s1, %s229
        %p231 = pneg %p84
        %p232 = pneg %p81
        %p233 = pneg %p105
        %p234 = pneg %p102
        %p235 = pneg %p131
        %p236 = pneg %p128
        %s237 = sand.u32 %s118, 1
        %s238 = scalar_lea.sflag [#allocation3], %s237
        %s239 = sand.u32 %s118, 1
        %s240 = smul.addr %s239, 2
        %s241 = scalar_lea.vmem [#allocation2], %s240
        %s242 = smul.u32 8, %s22
        %s243 = ssub.s32 18, %s242
        %p244 = scmp.lt.s32.totalorder %s243, 8
        %s245 = scalar_select %p244, %s243, 8
        %s246 = smul.u32 64, %s245
        %s247 = smul.u32 %s246, 3
        %p248 = scmp.lt.s32.totalorder %s21, 1
        %s249 = scalar_select %p248, %s21, 1
        %p250 = scmp.lt.s32.totalorder %s242, 17
        %s251 = scalar_select %p250, %s242, 17
        %s252 = smul.addr %s251, 3
        %s253 = smul.addr %s249, 54
        %s254 = sadd.s32 %s252, %s253
        %s255 = smul.addr %s254, 4
        %s256 = scalar_lea.vmem %s0, %s255
        %s257 = smul.u32 8, %s22
        %s258 = ssub.s32 18, %s257
        %p259 = scmp.lt.s32.totalorder %s258, 8
        %s260 = scalar_select %p259, %s258, 8
        %s261 = smul.u32 64, %s260
        %s262 = smul.u32 %s261, 3
        %s263 = sadd.s32 %s22, 1
        %s264 = smul.u32 %s263, 4
        %s265 = smul.u32 2, %s264
        %p266 = scmp.lt.s32.totalorder %s21, 1
        %s267 = scalar_select %p266, %s21, 1
        %p268 = scmp.lt.s32.totalorder %s265, 17
        %s269 = scalar_select %p268, %s265, 17
        %s270 = smul.addr %s269, 3
        %s271 = smul.addr %s267, 54
        %s272 = sadd.s32 %s270, %s271
        %s273 = smul.addr %s272, 4
        %s274 = scalar_lea.vmem %s1, %s273
        %s275 = sadd.s32 %s22, 1
        %s276 = smul.u32 %s275, 4
        %s277 = smul.u32 2, %s276
        %p279 = scmp.eq.s32.totalorder %s22, 0
        // Predicated region
        $region33: #{tpu_custom_call.1} parent=31 // pred_check
          %p280 = pneg %p279
        $region34: #{tpu_custom_call.1} parent=31 // pred_check_branch
          %282 = sbr.rel (%p280) target = $region36
        $region35: #{tpu_custom_call.1} parent=31 // pred_region
          %283 = vst [vmem:[%s241] sm:$0x3] 0.0
        $region36: #{tpu_custom_call.1} parent=31 // pred_fallthru
          _
        %v284 = vld [vmem:[%s256] sm:$0xf]
        %v285 = vld [vmem:[%s256 + $0x4] sm:$0xf]
        %v286 = vld [vmem:[%s256 + $0x8] sm:$0x1]
        %v287 = vld [vmem:[%s256 + $0xc] sm:$0xf]
        %v288 = vld [vmem:[%s256 + $0x10] sm:$0xf]
        %v289 = vld [vmem:[%s256 + $0x14] sm:$0x1]
        %v290 = vld [vmem:[%s256 + $0x18] sm:$0xf]
        %v291 = vld [vmem:[%s256 + $0x1c] sm:$0xf]
        %v292 = vld [vmem:[%s256 + $0x20] sm:$0x1]
        %v293 = vld [vmem:[%s256 + $0x24] sm:$0xf]
        %v294 = vld [vmem:[%s256 + $0x28] sm:$0xf]
        %v295 = vld [vmem:[%s256 + $0x2c] sm:$0x1]
        %v296 = vld [vmem:[%s256 + $0x30] sm:$0xf]
        %v297 = vld [vmem:[%s256 + $0x34] sm:$0xf]
        %v298 = vld [vmem:[%s256 + $0x38] sm:$0x1]
        %v299 = vld [vmem:[%s256 + $0x3c] sm:$0xf]
        %v300 = vld [vmem:[%s256 + $0x40] sm:$0xf]
        %v301 = vld [vmem:[%s256 + $0x44] sm:$0x1]
        %v302 = vld [vmem:[%s256 + $0x48] sm:$0xf]
        %v303 = vld [vmem:[%s256 + $0x4c] sm:$0xf]
        %v304 = vld [vmem:[%s256 + $0x50] sm:$0x1]
        %v305 = vld [vmem:[%s256 + $0x54] sm:$0xf]
        %v306 = vld [vmem:[%s256 + $0x58] sm:$0xf]
        %v307 = vld [vmem:[%s256 + $0x5c] sm:$0x1]
        %v308 = vld [vmem:[%s274] sm:$0xf]
        %v309 = vld [vmem:[%s274 + $0x4] sm:$0xf]
        %v310 = vld [vmem:[%s274 + $0x8] sm:$0x1]
        %v311 = vld [vmem:[%s274 + $0xc] sm:$0xf]
        %v312 = vld [vmem:[%s274 + $0x10] sm:$0xf]
        %v313 = vld [vmem:[%s274 + $0x14] sm:$0x1]
        %v330 = vunpack.c.l.b16 %v284
        %v331 = vunpack.c.l.b16 %v285
        %v332 = vunpack.c.l.b16 %v287
        %v333 = vunpack.c.l.b16 %v288
        %v334 = vunpack.c.l.b16 %v290
        %v335 = vunpack.c.l.b16 %v291
        %v336 = vunpack.c.l.b16 %v293
        %v337 = vunpack.c.l.b16 %v294
        %v338 = vunpack.c.l.b16 %v296
        %v339 = vunpack.c.l.b16 %v297
        %v340 = vunpack.c.l.b16 %v299
        %v341 = vunpack.c.l.b16 %v300
        %v342 = vunpack.c.l.b16 %v302
        %v343 = vunpack.c.l.b16 %v303
        %v344 = vunpack.c.l.b16 %v305
        %v345 = vunpack.c.l.b16 %v306
        %v346 = vpack.c.b16 %v331, %v330
        %v347 = vpack.c.b16 %v333, %v332
        %v348 = vpack.c.b16 %v335, %v334
        %v349 = vpack.c.b16 %v337, %v336
        %v350 = vpack.c.b16 %v339, %v338
        %v351 = vpack.c.b16 %v341, %v340
        %v352 = vpack.c.b16 %v343, %v342
        %v353 = vpack.c.b16 %v345, %v344
        %v362 = vunpack.c.l.b16 %v286
        %v363 = vunpack.c.l.b16 %v289
        %v364 = vunpack.c.l.b16 %v292
        %v365 = vunpack.c.l.b16 %v295
        %v366 = vunpack.c.l.b16 %v298
        %v367 = vunpack.c.l.b16 %v301
        %v368 = vunpack.c.l.b16 %v304
        %v369 = vunpack.c.l.b16 %v307
        %v370 = vpack.c.b16 %v362, %v362
        %v371 = vpack.c.b16 %v363, %v363
        %v372 = vpack.c.b16 %v364, %v364
        %v373 = vpack.c.b16 %v365, %v365
        %v374 = vpack.c.b16 %v366, %v366
        %v375 = vpack.c.b16 %v367, %v367
        %v376 = vpack.c.b16 %v368, %v368
        %v377 = vpack.c.b16 %v369, %v369
        %vm378 = vsmask.f32 7424
        %v380 = vshrl.u32 %v346, 16
        %v382 = vshll.u32 %v346, 16
        %v384 = vrot.slane %v382, 1
        %v385 = vor.u32 %v380, %v384
        %v387 = vshll.u32 %v370, 16
        %v389 = vrot.slane %v387, 1
        %v390 = vsel %vm378, %v385, %v389
        %v392 = vshrl.u32 %v347, 16
        %v394 = vshll.u32 %v347, 16
        %v396 = vrot.slane %v394, 1
        %v397 = vor.u32 %v392, %v396
        %v399 = vshll.u32 %v371, 16
        %v401 = vrot.slane %v399, 1
        %v402 = vsel %vm378, %v397, %v401
        %v404 = vshrl.u32 %v348, 16
        %v406 = vshll.u32 %v348, 16
        %v408 = vrot.slane %v406, 1
        %v409 = vor.u32 %v404, %v408
        %v411 = vshll.u32 %v372, 16
        %v413 = vrot.slane %v411, 1
        %v414 = vsel %vm378, %v409, %v413
        %v416 = vshrl.u32 %v349, 16
        %v418 = vshll.u32 %v349, 16
        %v420 = vrot.slane %v418, 1
        %v421 = vor.u32 %v416, %v420
        %v423 = vshll.u32 %v373, 16
        %v425 = vrot.slane %v423, 1
        %v426 = vsel %vm378, %v421, %v425
        %v428 = vshrl.u32 %v350, 16
        %v430 = vshll.u32 %v350, 16
        %v432 = vrot.slane %v430, 1
        %v433 = vor.u32 %v428, %v432
        %v435 = vshll.u32 %v374, 16
        %v437 = vrot.slane %v435, 1
        %v438 = vsel %vm378, %v433, %v437
        %v440 = vshrl.u32 %v351, 16
        %v442 = vshll.u32 %v351, 16
        %v444 = vrot.slane %v442, 1
        %v445 = vor.u32 %v440, %v444
        %v447 = vshll.u32 %v375, 16
        %v449 = vrot.slane %v447, 1
        %v450 = vsel %vm378, %v445, %v449
        %v452 = vshrl.u32 %v352, 16
        %v454 = vshll.u32 %v352, 16
        %v456 = vrot.slane %v454, 1
        %v457 = vor.u32 %v452, %v456
        %v459 = vshll.u32 %v376, 16
        %v461 = vrot.slane %v459, 1
        %v462 = vsel %vm378, %v457, %v461
        %v464 = vshrl.u32 %v353, 16
        %v466 = vshll.u32 %v353, 16
        %v468 = vrot.slane %v466, 1
        %v469 = vor.u32 %v464, %v468
        %v471 = vshll.u32 %v377, 16
        %v473 = vrot.slane %v471, 1
        %v474 = vsel %vm378, %v469, %v473
        %475 = vrot.lane.b32.xlu0 %v390, 4
        %v476 = vpop.permute.xlu0 %475
        %477 = vrot.lane.b32.xlu0 %v402, 4
        %v478 = vpop.permute.xlu0 %477
        %479 = vrot.lane.b32.xlu0 %v414, 4
        %v480 = vpop.permute.xlu0 %479
        %481 = vrot.lane.b32.xlu0 %v426, 4
        %v482 = vpop.permute.xlu0 %481
        %483 = vrot.lane.b32.xlu0 %v438, 4
        %v484 = vpop.permute.xlu0 %483
        %485 = vrot.lane.b32.xlu0 %v450, 4
        %v486 = vpop.permute.xlu0 %485
        %487 = vrot.lane.b32.xlu0 %v462, 4
        %v488 = vpop.permute.xlu0 %487
        %489 = vrot.lane.b32.xlu0 %v474, 4
        %v490 = vpop.permute.xlu0 %489
        %vm491 = vcmask 1046528
        %v492 = vrot.slane %v346, 1
        %v493 = vrot.slane %v370, 1
        %v494 = vsel %vm491, %v492, %v493
        %v495 = vrot.slane %v347, 1
        %v496 = vrot.slane %v371, 1
        %v497 = vsel %vm491, %v495, %v496
        %v498 = vrot.slane %v348, 1
        %v499 = vrot.slane %v372, 1
        %v500 = vsel %vm491, %v498, %v499
        %v501 = vrot.slane %v349, 1
        %v502 = vrot.slane %v373, 1
        %v503 = vsel %vm491, %v501, %v502
        %v504 = vrot.slane %v350, 1
        %v505 = vrot.slane %v374, 1
        %v506 = vsel %vm491, %v504, %v505
        %v507 = vrot.slane %v351, 1
        %v508 = vrot.slane %v375, 1
        %v509 = vsel %vm491, %v507, %v508
        %v510 = vrot.slane %v352, 1
        %v511 = vrot.slane %v376, 1
        %v512 = vsel %vm491, %v510, %v511
        %v513 = vrot.slane %v353, 1
        %v514 = vrot.slane %v377, 1
        %v515 = vsel %vm491, %v513, %v514
        %516 = vrot.lane.b32.xlu0 %v494, 8
        %v517 = vpop.permute.xlu0 %516
        %518 = vrot.lane.b32.xlu0 %v497, 8
        %v519 = vpop.permute.xlu0 %518
        %520 = vrot.lane.b32.xlu0 %v500, 8
        %v521 = vpop.permute.xlu0 %520
        %522 = vrot.lane.b32.xlu0 %v503, 8
        %v523 = vpop.permute.xlu0 %522
        %524 = vrot.lane.b32.xlu0 %v506, 8
        %v525 = vpop.permute.xlu0 %524
        %526 = vrot.lane.b32.xlu0 %v509, 8
        %v527 = vpop.permute.xlu0 %526
        %528 = vrot.lane.b32.xlu0 %v512, 8
        %v529 = vpop.permute.xlu0 %528
        %530 = vrot.lane.b32.xlu0 %v515, 8
        %v531 = vpop.permute.xlu0 %530
        %v534 = vunpack.c.l.b16 %v308
        %v535 = vunpack.c.l.b16 %v309
        %v536 = vpack.c.b16 %v535, %v534
        %537 = vrot.lane.b32.xlu0 %v347, 12
        %v538 = vpop.permute.xlu0 %537
        %539 = vrot.lane.b32.xlu0 %v348, 12
        %v540 = vpop.permute.xlu0 %539
        %541 = vrot.lane.b32.xlu0 %v349, 12
        %v542 = vpop.permute.xlu0 %541
        %543 = vrot.lane.b32.xlu0 %v350, 12
        %v544 = vpop.permute.xlu0 %543
        %545 = vrot.lane.b32.xlu0 %v351, 12
        %v546 = vpop.permute.xlu0 %545
        %547 = vrot.lane.b32.xlu0 %v352, 12
        %v548 = vpop.permute.xlu0 %547
        %549 = vrot.lane.b32.xlu0 %v353, 12
        %v550 = vpop.permute.xlu0 %549
        %551 = vrot.lane.b32.xlu0 %v536, 12
        %v552 = vpop.permute.xlu0 %551
        %v554 = vunpack.c.l.b16 %v310
        %v555 = vpack.c.b16 %v554, %v554
        %v557 = vshrl.u32 %v536, 16
        %v559 = vshll.u32 %v536, 16
        %v561 = vrot.slane %v559, 1
        %v562 = vor.u32 %v557, %v561
        %v564 = vshll.u32 %v555, 16
        %v566 = vrot.slane %v564, 1
        %v567 = vsel %vm378, %v562, %v566
        %568 = vrot.lane.b32.xlu0 %v402, 16
        %v569 = vpop.permute.xlu0 %568
        %570 = vrot.lane.b32.xlu0 %v414, 16
        %v571 = vpop.permute.xlu0 %570
        %572 = vrot.lane.b32.xlu0 %v426, 16
        %v573 = vpop.permute.xlu0 %572
        %574 = vrot.lane.b32.xlu0 %v438, 16
        %v575 = vpop.permute.xlu0 %574
        %576 = vrot.lane.b32.xlu0 %v450, 16
        %v577 = vpop.permute.xlu0 %576
        %578 = vrot.lane.b32.xlu0 %v462, 16
        %v579 = vpop.permute.xlu0 %578
        %580 = vrot.lane.b32.xlu0 %v474, 16
        %v581 = vpop.permute.xlu0 %580
        %582 = vrot.lane.b32.xlu0 %v567, 16
        %v583 = vpop.permute.xlu0 %582
        %v584 = vrot.slane %v536, 1
        %v585 = vrot.slane %v555, 1
        %v586 = vsel %vm491, %v584, %v585
        %587 = vrot.lane.b32.xlu0 %v497, 20
        %v588 = vpop.permute.xlu0 %587
        %589 = vrot.lane.b32.xlu0 %v500, 20
        %v590 = vpop.permute.xlu0 %589
        %591 = vrot.lane.b32.xlu0 %v503, 20
        %v592 = vpop.permute.xlu0 %591
        %593 = vrot.lane.b32.xlu0 %v506, 20
        %v594 = vpop.permute.xlu0 %593
        %595 = vrot.lane.b32.xlu0 %v509, 20
        %v596 = vpop.permute.xlu0 %595
        %597 = vrot.lane.b32.xlu0 %v512, 20
        %v598 = vpop.permute.xlu0 %597
        %599 = vrot.lane.b32.xlu0 %v515, 20
        %v600 = vpop.permute.xlu0 %599
        %601 = vrot.lane.b32.xlu0 %v586, 20
        %v602 = vpop.permute.xlu0 %601
        %v605 = vunpack.c.l.b16 %v311
        %v606 = vunpack.c.l.b16 %v312
        %v607 = vpack.c.b16 %v606, %v605
        %608 = vrot.lane.b32.xlu0 %v348, 24
        %v609 = vpop.permute.xlu0 %608
        %610 = vrot.lane.b32.xlu0 %v349, 24
        %v611 = vpop.permute.xlu0 %610
        %612 = vrot.lane.b32.xlu0 %v350, 24
        %v613 = vpop.permute.xlu0 %612
        %614 = vrot.lane.b32.xlu0 %v351, 24
        %v615 = vpop.permute.xlu0 %614
        %616 = vrot.lane.b32.xlu0 %v352, 24
        %v617 = vpop.permute.xlu0 %616
        %618 = vrot.lane.b32.xlu0 %v353, 24
        %v619 = vpop.permute.xlu0 %618
        %620 = vrot.lane.b32.xlu0 %v536, 24
        %v621 = vpop.permute.xlu0 %620
        %622 = vrot.lane.b32.xlu0 %v607, 24
        %v623 = vpop.permute.xlu0 %622
        %v625 = vunpack.c.l.b16 %v313
        %v626 = vpack.c.b16 %v625, %v625
        %v628 = vshrl.u32 %v607, 16
        %v630 = vshll.u32 %v607, 16
        %v632 = vrot.slane %v630, 1
        %v633 = vor.u32 %v628, %v632
        %v635 = vshll.u32 %v626, 16
        %v637 = vrot.slane %v635, 1
        %v638 = vsel %vm378, %v633, %v637
        %639 = vrot.lane.b32.xlu0 %v414, 28
        %v640 = vpop.permute.xlu0 %639
        %641 = vrot.lane.b32.xlu0 %v426, 28
        %v642 = vpop.permute.xlu0 %641
        %643 = vrot.lane.b32.xlu0 %v438, 28
        %v644 = vpop.permute.xlu0 %643
        %645 = vrot.lane.b32.xlu0 %v450, 28
        %v646 = vpop.permute.xlu0 %645
        %647 = vrot.lane.b32.xlu0 %v462, 28
        %v648 = vpop.permute.xlu0 %647
        %649 = vrot.lane.b32.xlu0 %v474, 28
        %v650 = vpop.permute.xlu0 %649
        %651 = vrot.lane.b32.xlu0 %v567, 28
        %v652 = vpop.permute.xlu0 %651
        %653 = vrot.lane.b32.xlu0 %v638, 28
        %v654 = vpop.permute.xlu0 %653
        %v655 = vrot.slane %v607, 1
        %v656 = vrot.slane %v626, 1
        %v657 = vsel %vm491, %v655, %v656
        %658 = vrot.lane.b32.xlu0 %v500, 32
        %v659 = vpop.permute.xlu0 %658
        %660 = vrot.lane.b32.xlu0 %v503, 32
        %v661 = vpop.permute.xlu0 %660
        %662 = vrot.lane.b32.xlu0 %v506, 32
        %v663 = vpop.permute.xlu0 %662
        %664 = vrot.lane.b32.xlu0 %v509, 32
        %v665 = vpop.permute.xlu0 %664
        %666 = vrot.lane.b32.xlu0 %v512, 32
        %v667 = vpop.permute.xlu0 %666
        %668 = vrot.lane.b32.xlu0 %v515, 32
        %v669 = vpop.permute.xlu0 %668
        %670 = vrot.lane.b32.xlu0 %v586, 32
        %v671 = vpop.permute.xlu0 %670
        %672 = vrot.lane.b32.xlu0 %v657, 32
        %v673 = vpop.permute.xlu0 %672
        %vm674 = vcmask 31744
        %v676 = vsel %vm674, %v346, %v476
        %v678 = vsel %vm674, %v347, %v478
        %v680 = vsel %vm674, %v348, %v480
        %v682 = vsel %vm674, %v349, %v482
        %v684 = vsel %vm674, %v350, %v484
        %v686 = vsel %vm674, %v351, %v486
        %v688 = vsel %vm674, %v352, %v488
        %v690 = vsel %vm674, %v353, %v490
        %vm691 = vcmask 64512
        %v693 = vsel %vm691, %v676, %v517
        %v695 = vsel %vm691, %v678, %v519
        %v697 = vsel %vm691, %v680, %v521
        %v699 = vsel %vm691, %v682, %v523
        %v701 = vsel %vm691, %v684, %v525
        %v703 = vsel %vm691, %v686, %v527
        %v705 = vsel %vm691, %v688, %v529
        %v707 = vsel %vm691, %v690, %v531
        %vm708 = vcmask 97280
        %v710 = vsel %vm708, %v693, %v538
        %v712 = vsel %vm708, %v695, %v540
        %v714 = vsel %vm708, %v697, %v542
        %v716 = vsel %vm708, %v699, %v544
        %v718 = vsel %vm708, %v701, %v546
        %v720 = vsel %vm708, %v703, %v548
        %v722 = vsel %vm708, %v705, %v550
        %v724 = vsel %vm708, %v707, %v552
        %vm725 = vcmask 130048
        %v727 = vsel %vm725, %v710, %v569
        %v729 = vsel %vm725, %v712, %v571
        %v731 = vsel %vm725, %v714, %v573
        %v733 = vsel %vm725, %v716, %v575
        %v735 = vsel %vm725, %v718, %v577
        %v737 = vsel %vm725, %v720, %v579
        %v739 = vsel %vm725, %v722, %v581
        %v741 = vsel %vm725, %v724, %v583
        %vm742 = vcmask 162816
        %v744 = vsel %vm742, %v727, %v588
        %v746 = vsel %vm742, %v729, %v590
        %v748 = vsel %vm742, %v731, %v592
        %v750 = vsel %vm742, %v733, %v594
        %v752 = vsel %vm742, %v735, %v596
        %v754 = vsel %vm742, %v737, %v598
        %v756 = vsel %vm742, %v739, %v600
        %v758 = vsel %vm742, %v741, %v602
        %vm759 = vcmask 195584
        %v761 = vsel %vm759, %v744, %v609
        %v763 = vsel %vm759, %v746, %v611
        %v765 = vsel %vm759, %v748, %v613
        %v767 = vsel %vm759, %v750, %v615
        %v769 = vsel %vm759, %v752, %v617
        %v771 = vsel %vm759, %v754, %v619
        %v773 = vsel %vm759, %v756, %v621
        %v775 = vsel %vm759, %v758, %v623
        %vm776 = vcmask 228352
        %v778 = vsel %vm776, %v761, %v640
        %v780 = vsel %vm776, %v763, %v642
        %v782 = vsel %vm776, %v765, %v644
        %v784 = vsel %vm776, %v767, %v646
        %v786 = vsel %vm776, %v769, %v648
        %v788 = vsel %vm776, %v771, %v650
        %v790 = vsel %vm776, %v773, %v652
        %v792 = vsel %vm776, %v775, %v654
        %vm793 = vcmask 261120
        %v795 = vsel %vm793, %v778, %v659
        %v797 = vsel %vm793, %v780, %v661
        %v799 = vsel %vm793, %v782, %v663
        %v801 = vsel %vm793, %v784, %v665
        %v803 = vsel %vm793, %v786, %v667
        %v805 = vsel %vm793, %v788, %v669
        %v807 = vsel %vm793, %v790, %v671
        %v809 = vsel %vm793, %v792, %v673
        %v810 = vld [vmem:[%s2] sm:$0xf]
        %v811 = vld [vmem:[%s2 + $0x4] sm:$0xf]
        %v812 = vld [vmem:[%s2 + $0x8] sm:$0xf]
        %v813 = vld [vmem:[%s2 + $0xc] sm:$0xf]
        %v814 = vld [vmem:[%s2 + $0x10] sm:$0x3]
        %v820 = vunpack.c.l.b16 %v810
        %v821 = vunpack.c.l.b16 %v811
        %v822 = vunpack.c.l.b16 %v812
        %v823 = vunpack.c.l.b16 %v813
        %v824 = vunpack.c.l.b16 %v814
        %v825 = vpack.c.b16 %v821, %v820
        %v826 = vpack.c.b16 %v823, %v822
        %v827 = vpack.c.b16 %v824, %v824
        %vm830 = vcmask 293888
        %v831 = vsel %vm830, %v795, 0
        %v833 = vsel %vm830, %v797, 0
        %v835 = vsel %vm830, %v799, 0
        %v837 = vsel %vm830, %v801, 0
        %v839 = vsel %vm830, %v803, 0
        %v841 = vsel %vm830, %v805, 0
        %v843 = vsel %vm830, %v807, 0
        %v845 = vsel %vm830, %v809, 0
        %vm847 = vcmask 1041408
        %v849 = vsel %vm847, %v827, 0
        %851 = vmatprep.subr.bf16.mxu0 0
        %852 = vmatpush1.bf16.msra.mxu0 %v825
        %853 = vmatprep.subr.bf16.mxu0 0
        %854 = vmatpush1.bf16.msra.mxu0 %v826
        %855 = vmatprep.subr.bf16.mxu0 0
        %856 = vmatpush1.bf16.msra.mxu0 %v849
        %857 = vmatprep.subr.bf16.mxu0 0
        %858 = vmatpush1.bf16.msra.mxu0 0
        %859 = vmatprep.subr.bf16.mxu0 0
        %860 = vmatpush1.bf16.msra.mxu0 0
        %861 = vmatprep.subr.bf16.mxu0 0
        %862 = vmatpush1.bf16.msra.mxu0 0
        %863 = vmatprep.subr.bf16.mxu0 0
        %864 = vmatpush1.bf16.msra.mxu0 0
        %865 = vmatprep.subr.bf16.mxu0 0
        %866 = vmatpush1.bf16.msra.mxu0 0
        %867 = vmatprep.subr.bf16.mxu0 0
        %868 = vmatpush1.bf16.msra.mxu0 0
        %869 = vmatprep.subr.bf16.mxu0 0
        %870 = vmatpush1.bf16.msra.mxu0 0
        %871 = vmatprep.subr.bf16.mxu0 0
        %872 = vmatpush1.bf16.msra.mxu0 0
        %873 = vmatprep.subr.bf16.mxu0 0
        %874 = vmatpush1.bf16.msra.mxu0 0
        %875 = vmatprep.subr.bf16.mxu0 0
        %876 = vmatpush1.bf16.msra.mxu0 0
        %877 = vmatprep.subr.bf16.mxu0 0
        %878 = vmatpush1.bf16.msra.mxu0 0
        %879 = vmatprep.subr.bf16.mxu0 0
        %880 = vmatpush1.bf16.msra.mxu0 0
        %881 = vmatprep.subr.bf16.mxu0 0
        %882 = vmatpush1.bf16.msra.mxu0 0
        %883 = vmatprep.mubr.bf16.mxu0 0
        %884 = vmatmul.mubr.bf16.gmra.mrb[0].mxu0 %v831
        %v885 = vpop.f32.mrb[0].mxu0
        %v886 = vadd.f32 0.0, %v885
        %v887 = vpop.f32.mrb[0].mxu0
        %v888 = vpop.f32.mrb[0].mxu0
        %v889 = vadd.f32 0.0, %v888
        %v890 = vpop.f32.mrb[0].mxu0
        %891 = vmatprep.mubr.bf16.mxu0 0
        %892 = vmatmul.mubr.bf16.gmra.mrb[0].mxu0 %v833
        %v893 = vpop.f32.mrb[0].mxu0
        %v894 = vadd.f32 0.0, %v893
        %v895 = vpop.f32.mrb[0].mxu0
        %v896 = vpop.f32.mrb[0].mxu0
        %v897 = vadd.f32 0.0, %v896
        %v898 = vpop.f32.mrb[0].mxu0
        %899 = vmatprep.mubr.bf16.mxu0 0
        %900 = vmatmul.mubr.bf16.gmra.mrb[0].mxu0 %v835
        %v901 = vpop.f32.mrb[0].mxu0
        %v902 = vadd.f32 0.0, %v901
        %v903 = vpop.f32.mrb[0].mxu0
        %v904 = vpop.f32.mrb[0].mxu0
        %v905 = vadd.f32 0.0, %v904
        %v906 = vpop.f32.mrb[0].mxu0
        %907 = vmatprep.mubr.bf16.mxu0 0
        %908 = vmatmul.mubr.bf16.gmra.mrb[0].mxu0 %v837
        %v909 = vpop.f32.mrb[0].mxu0
        %v910 = vadd.f32 0.0, %v909
        %v911 = vpop.f32.mrb[0].mxu0
        %v912 = vpop.f32.mrb[0].mxu0
        %v913 = vadd.f32 0.0, %v912
        %v914 = vpop.f32.mrb[0].mxu0
        %915 = vmatprep.mubr.bf16.mxu0 0
        %916 = vmatmul.mubr.bf16.gmra.mrb[0].mxu0 %v839
        %v917 = vpop.f32.mrb[0].mxu0
        %v918 = vadd.f32 0.0, %v917
        %v919 = vpop.f32.mrb[0].mxu0
        %v920 = vpop.f32.mrb[0].mxu0
        %v921 = vadd.f32 0.0, %v920
        %v922 = vpop.f32.mrb[0].mxu0
        %923 = vmatprep.mubr.bf16.mxu0 0
        %924 = vmatmul.mubr.bf16.gmra.mrb[0].mxu0 %v841
        %v925 = vpop.f32.mrb[0].mxu0
        %v926 = vadd.f32 0.0, %v925
        %v927 = vpop.f32.mrb[0].mxu0
        %v928 = vpop.f32.mrb[0].mxu0
        %v929 = vadd.f32 0.0, %v928
        %v930 = vpop.f32.mrb[0].mxu0
        %931 = vmatprep.mubr.bf16.mxu0 0
        %932 = vmatmul.mubr.bf16.gmra.mrb[0].mxu0 %v843
        %v933 = vpop.f32.mrb[0].mxu0
        %v934 = vadd.f32 0.0, %v933
        %v935 = vpop.f32.mrb[0].mxu0
        %v936 = vpop.f32.mrb[0].mxu0
        %v937 = vadd.f32 0.0, %v936
        %v938 = vpop.f32.mrb[0].mxu0
        %939 = vmatprep.mubr.bf16.mxu0 0
        %940 = vmatmul.mubr.bf16.gmra.mrb[0].mxu0 %v845
        %v941 = vpop.f32.mrb[0].mxu0
        %v942 = vadd.f32 0.0, %v941
        %v943 = vpop.f32.mrb[0].mxu0
        %v944 = vpop.f32.mrb[0].mxu0
        %v945 = vadd.f32 0.0, %v944
        %v946 = vpop.f32.mrb[0].mxu0
        %947 = vdwg.mxu0
        %v948 = vld [vmem:[%s241] sm:$0x1]
        %v949 = vadd.f32 %v886, %v889
        %v950 = vadd.f32 %v949, %v894
        %v951 = vadd.f32 %v950, %v897
        %v952 = vadd.f32 %v951, %v902
        %v953 = vadd.f32 %v952, %v905
        %v954 = vadd.f32 %v953, %v910
        %v955 = vadd.f32 %v954, %v913
        %v956 = vadd.f32 %v955, %v918
        %v957 = vadd.f32 %v956, %v921
        %v958 = vadd.f32 %v957, %v926
        %v959 = vadd.f32 %v958, %v929
        %v960 = vadd.f32 %v959, %v934
        %v961 = vadd.f32 %v960, %v937
        %v962 = vadd.f32 %v961, %v942
        %v963 = vadd.f32 %v962, %v945
        %v964 = vrot.slane %v963, 4
        %v965 = vadd.f32 %v963, %v964
        %v966 = vrot.slane %v965, 2
        %v967 = vadd.f32 %v965, %v966
        %v968 = vrot.slane %v967, 1
        %v969 = vadd.f32 %v967, %v968
        %v970 = vadd.f32 %v948, %v969
        %971 = vst [vmem:[%s241] sm:$0x1] %v970
        %v972 = vld [vmem:[%s241 + $0x1] sm:$0x1]
        %v973 = vmul.f32 %v886, %v886
        %v974 = vmul.f32 %v889, %v889
        %v975 = vmul.f32 %v894, %v894
        %v976 = vmul.f32 %v897, %v897
        %v977 = vmul.f32 %v902, %v902
        %v978 = vmul.f32 %v905, %v905
        %v979 = vmul.f32 %v910, %v910
        %v980 = vmul.f32 %v913, %v913
        %v981 = vmul.f32 %v918, %v918
        %v982 = vmul.f32 %v921, %v921
        %v983 = vmul.f32 %v926, %v926
        %v984 = vmul.f32 %v929, %v929
        %v985 = vmul.f32 %v934, %v934
        %v986 = vmul.f32 %v937, %v937
        %v987 = vmul.f32 %v942, %v942
        %v988 = vmul.f32 %v945, %v945
        %v989 = vadd.f32 %v973, %v974
        %v990 = vadd.f32 %v989, %v975
        %v991 = vadd.f32 %v990, %v976
        %v992 = vadd.f32 %v991, %v977
        %v993 = vadd.f32 %v992, %v978
        %v994 = vadd.f32 %v993, %v979
        %v995 = vadd.f32 %v994, %v980
        %v996 = vadd.f32 %v995, %v981
        %v997 = vadd.f32 %v996, %v982
        %v998 = vadd.f32 %v997, %v983
        %v999 = vadd.f32 %v998, %v984
        %v1000 = vadd.f32 %v999, %v985
        %v1001 = vadd.f32 %v1000, %v986
        %v1002 = vadd.f32 %v1001, %v987
        %v1003 = vadd.f32 %v1002, %v988
        %v1004 = vrot.slane %v1003, 4
        %v1005 = vadd.f32 %v1003, %v1004
        %v1006 = vrot.slane %v1005, 2
        %v1007 = vadd.f32 %v1005, %v1006
        %v1008 = vrot.slane %v1007, 1
        %v1009 = vadd.f32 %v1007, %v1008
        %v1010 = vadd.f32 %v972, %v1009
        %1011 = vst [vmem:[%s241 + $0x1] sm:$0x1] %v1010
        %s1012 = sand.u32 %s118, 1
        %s1013 = scalar_lea.sflag [#allocation3], %s1012
        %s1014 = sand.u32 %s118, 1
        %s1015 = smul.addr %s1014, 2
        %s1016 = scalar_lea.vmem [#allocation2], %s1015
        // Predicated region
        $region37: #{tpu_custom_call.1} parent=31 // pred_check
          %p1017 = pneg %p128
        $region38: #{tpu_custom_call.1} parent=31 // pred_check_branch
          %1019 = sbr.rel (%p1017) target = $region40
        $region39: #{tpu_custom_call.1} parent=31 // pred_region
          %s1021 = ssub.s32 32, 32
          %1022 = vsyncadd %s1013, %s1021
          %s1023 = smul.addr %s21, 32
          %s1024 = scalar_lea.hbm %s3, %s1023
          %s1026 = sshll.u32 %s1016, 4
          %s1027 = int_to_ptr.vmem [resolvable:$true] %s1026
          %1029 = dma.vmem_to_hbm [thread:$0]  %s1027, 32, %s1024, %s1013
        $region40: #{tpu_custom_call.1} parent=31 // pred_fallthru
          _
      $region32: #{tpu_custom_call.1} parent=5 // pred_fallthru
        _
      %p1030 = scmp.le.s32.totalorder 2, %s12
      // Predicated region
      $region41: #{tpu_custom_call.1} parent=5 // pred_check
        %p1031 = pneg %p1030
      $region42: #{tpu_custom_call.1} parent=5 // pred_check_branch
        %1033 = sbr.rel (%p1031) target = $region44
      $region43: #{tpu_custom_call.1} parent=5 // pred_region
        %s1034 = ssub.s32 %s12, 2
        // Predicated region
        $region45: #{tpu_custom_call.1} parent=43 // pred_check
          %p1035 = pneg %p134
        $region46: #{tpu_custom_call.1} parent=43 // pred_check_branch
          %1037 = sbr.rel (%p1035) target = $region48
        $region47: #{tpu_custom_call.1} parent=43 // pred_region
          %s1038 = sand.u32 %s119, 1
          %s1039 = scalar_lea.sflag [#allocation3], %s1038
          %s1040 = sand.u32 %s119, 1
          %s1041 = smul.addr %s1040, 2
          %s1042 = scalar_lea.vmem [#allocation2], %s1041
          %1043 = dma.done %s1039, 32
        $region48: #{tpu_custom_call.1} parent=43 // pred_fallthru
          _
      $region44: #{tpu_custom_call.1} parent=5 // pred_fallthru
        _
    $region6: #{tpu_custom_call.1} parent=1 // loop_footer
      %s16 = sadd.s32 1, %s12
    $region7: #{tpu_custom_call.1} parent=1 // loop_footer_branch
      %11 = sbr.rel target = $region3
    $region8: #{tpu_custom_call.1} parent=1 // loop_exit
      _
    %1044 = vsyncpa [#allocation3], 1
    %s1045 = scalar_lea.sflag [#allocation3], 1
    %1046 = vsyncpa %s1045, 1

</llo_original>
